<compile_context>
chip_gen: v7x
topology: tpu7x:2x2x1
jax: 0.10.0
libtpu: 0.0.40
codegen_flags: <defaults>
</compile_context>

<pallas_src>
import functools

import jax
import jax.numpy as jnp
from jax.experimental import pallas as pl
from jax.experimental.pallas import tpu as pltpu

_LANE = 128
_SUBLANE = 8


def _round_up(n, m):
    return ((n + m - 1) // m) * m


# ---------------------------------------------------------------------------
# Kernel
# ---------------------------------------------------------------------------
def _decoder_kernel(x_ref, *rest, n_layers):
    """Fused decoder: h = x; for each layer h = act(h @ W + b).

    rest = (w_0, b_0, w_1, b_1, ..., w_{L-1}, b_{L-1}, o_ref)
    Weights are bf16 (in, out_pad); biases and the epilogue are f32.
    Padded weight columns / bias entries are 0, ReLU(0)=0 keeps hidden padding
    exactly 0, so every real output column is exact.
    """
    o_ref = rest[-1]
    h = x_ref[...].astype(jnp.float32)
    for l in range(n_layers):
        w_ref = rest[2 * l]
        b_ref = rest[2 * l + 1]
        # bf16 MXU matmul with f32 accumulation.
        y = jnp.dot(h.astype(w_ref.dtype), w_ref[...],
                    preferred_element_type=jnp.float32)
        y = y + b_ref[...]                     # (TB, out) + (1, out), f32
        if l < n_layers - 1:
            h = jnp.maximum(y, 0.0)            # ReLU
        else:
            # sigmoid(y) = 1 / (1 + exp(-y)); exp + approx reciprocal -> EUP.
            h = pl.reciprocal(1.0 + jnp.exp(-y), approx=True)
    o_ref[...] = h.astype(o_ref.dtype)


# ---------------------------------------------------------------------------
# One-time parameter preparation (hoisted out of the forward path)
# ---------------------------------------------------------------------------
def prepare_decoder_params(params, *, weight_dtype=jnp.bfloat16):
    """Pad + cast the decoder weights ONCE.

    params: list of (w_t (in, out) f32, b (1, out) f32) in forward order.
    Layer 0 keeps its true contraction dim (no lane padding of the input);
    every layer's output dim is padded to a multiple of 128 lanes with zeros.
    """
    in_f = params[0][0].shape[0]
    out_f = params[-1][0].shape[1]
    out_pads = [_round_up(w.shape[1], _LANE) for (w, _) in params]
    in_dims = [in_f] + out_pads[:-1]          # contraction dims seen by the kernel

    layers = []
    for (w, b), ip, op in zip(params, in_dims, out_pads):
        w_p = (jnp.zeros((ip, op), jnp.float32)
               .at[: w.shape[0], : w.shape[1]].set(w)
               .astype(weight_dtype))          # pad + cast once, stays in HBM
        b_p = jnp.zeros((1, op), jnp.float32).at[:, : b.shape[1]].set(b)
        layers.append((w_p, b_p))

    return {
        "layers": layers,
        "in_f": in_f,
        "out_f": out_f,
        "in_dims": in_dims,
        "out_pads": out_pads,
    }


def _default_vmem_limit_bytes():
    """Per-chip VMEM budget: tight on v7x (64 MiB physical), roomy on v5e/v6e."""
    try:
        kind = jax.devices()[0].device_kind.lower()
    except Exception:  # pragma: no cover
        kind = ""
    if "v7" in kind:
        return 32 * 1024 * 1024
    return 64 * 1024 * 1024


# ---------------------------------------------------------------------------
# Forward pass
# ---------------------------------------------------------------------------
def decoder_forward(encoded, prepared, *, batch_tile=256, vmem_limit_bytes=None):
    """Run the full decoder MLP in a single fused pallas_call.

    encoded:  (B, in_f) f32 — passed to the kernel UNPADDED along features.
    prepared: output of prepare_decoder_params (pre-padded bf16 weights).

    Returns the padded (b_pad, out_pad) f32 buffer; the module-equivalent
    result is out[:B, :prepared['out_f']] (slice lazily in the consumer to
    avoid an extra HBM pass per call).
    """
    layers = prepared["layers"]
    n_layers = len(layers)
    in_f = prepared["in_f"]
    in_dims = prepared["in_dims"]
    out_pads = prepared["out_pads"]
    out_pad = out_pads[-1]

    B, in_f_x = encoded.shape
    assert in_f_x == in_f, (in_f_x, in_f)

    # Batch tile: multiple of 8 sublanes, capped by the batch itself.
    tb = max(_SUBLANE, _round_up(min(batch_tile, B), _SUBLANE))
    b_pad = _round_up(B, tb)
    # v7x: guarantee >= 2 grid steps so dimension_semantics=("parallel",)
    # actually engages both TensorCores (no-op on v5e/v6e single-TC chips).
    if b_pad // tb < 2 and B > _SUBLANE:
        tb = _round_up(-(-b_pad // 2), _SUBLANE)
        b_pad = _round_up(B, tb)
    grid = (b_pad // tb,)

    # Only pad the batch dim, and only when it doesn't divide the tile.
    x = encoded
    if b_pad != B:
        x = jnp.zeros((b_pad, in_f), encoded.dtype).at[:B].set(encoded)

    args = [x]
    # Input block keeps the true feature width (last dim == full array dim).
    in_specs = [pl.BlockSpec((tb, in_f), lambda i: (i, 0))]
    for w_p, b_p in layers:
        args.append(w_p)
        args.append(b_p)
        # Full-array blocks, constant index_map -> VMEM-resident across steps.
        in_specs.append(pl.BlockSpec(w_p.shape, lambda i: (0, 0)))
        in_specs.append(pl.BlockSpec(b_p.shape, lambda i: (0, 0)))

    out_spec = pl.BlockSpec((tb, out_pad), lambda i: (i, 0))  # lane-dense store

    # Cost estimate for XLA's scheduler.
    w_itemsize = jnp.dtype(layers[0][0].dtype).itemsize
    flops = 2 * b_pad * sum(ip * op for ip, op in zip(in_dims, out_pads))
    bytes_accessed = (
        b_pad * in_f * 4
        + sum(ip * op * w_itemsize + op * 4 for ip, op in zip(in_dims, out_pads))
        + b_pad * out_pad * 4
    )
    cost = pl.CostEstimate(
        flops=flops,
        transcendentals=b_pad * out_pad,   # exp in the final sigmoid
        bytes_accessed=bytes_accessed,
    )

    if vmem_limit_bytes is None:
        # Budget check: 2x (double-buffered) resident weights/biases +
        # double-buffered batch tiles + f32 intermediates must fit the limit.
        resident = sum(w.size * w_itemsize + b.size * 4 for w, b in layers)
        tiles = 2 * (tb * in_f * 4 + tb * out_pad * 4)
        interm = 4 * tb * max(out_pads) * 4
        needed = 2 * resident + tiles + interm
        vmem_limit_bytes = max(_default_vmem_limit_bytes(), 2 * needed)

    kernel = functools.partial(_decoder_kernel, n_layers=n_layers)
    out_p = pl.pallas_call(
        kernel,
        out_shape=jax.ShapeDtypeStruct((b_pad, out_pad), jnp.float32),
        grid=grid,
        in_specs=in_specs,
        out_specs=out_spec,
        compiler_params=pltpu.CompilerParams(
            dimension_semantics=("parallel",),   # batch tiles across TCs on v7x
            vmem_limit_bytes=vmem_limit_bytes,
        ),
        cost_estimate=cost,
    )(*args)

    return out_p


# ---------------------------------------------------------------------------
# Init + reference
# ---------------------------------------------------------------------------
def init_decoder_params(key, sizes):
    """Mimic nn.Linear default init (uniform(-1/sqrt(fan_in), 1/sqrt(fan_in))).

    `sizes` is the constructor argument; the Decoder reverses it internally.
    Returns list of (w_t, b) with w_t already (in, out) and b (1, out), f32.
    """
    sizes = sizes[::-1]
    params = []
    n_layers = len(sizes) - 1
    for i in range(n_layers):
        fan_in, fan_out = sizes[i], sizes[i + 1]
        key, kw, kb = jax.random.split(key, 3)
        bound = 1.0 / jnp.sqrt(jnp.float32(fan_in))
        # PyTorch stores W as (out, in); we keep the transposed (in, out) copy.
        w_t = jax.random.uniform(
            kw, (fan_in, fan_out), jnp.float32, minval=-bound, maxval=bound
        )
        b = jax.random.uniform(
            kb, (1, fan_out), jnp.float32, minval=-bound, maxval=bound
        )
        params.append((w_t, b))
    return params


def decoder_forward_ref(encoded, params):
    """Pure-JAX f32 reference."""
    h = encoded
    n = len(params)
    for i, (w_t, b) in enumerate(params):
        h = h @ w_t + b
        h = jnp.maximum(h, 0.0) if i < n - 1 else jax.nn.sigmoid(h)
    return h


if __name__ == "__main__":
    # Decoder(sizes=[64, 32, 16]) => Linear(16,32)+ReLU, Linear(32,64)+Sigmoid
    sizes = [64, 32, 16]
    batch = 128

    key = jax.random.PRNGKey(0)
    key, k_x = jax.random.split(key)
    encoded = jax.random.normal(k_x, (batch, sizes[-1]), jnp.float32)

    params = init_decoder_params(key, sizes)
    prepared = prepare_decoder_params(params)       # pad + bf16 cast ONCE

    out_p = decoder_forward(encoded, prepared)       # default batch_tile=256
    out_p = jax.block_until_ready(out_p)

    # Module-equivalent view (consumer-side lazy slice of the padded buffer).
    out = out_p[:batch, : prepared["out_f"]]

    ref = decoder_forward_ref(encoded, params)
    assert out.shape == (batch, sizes[0]), out.shape
    max_err = float(jnp.max(jnp.abs(out - ref)))
    # bf16 matmul + approx-reciprocal sigmoid: small, bounded deviation vs f32.
    assert max_err < 2e-2, f"mismatch vs reference: max abs err {max_err}"

    print("KERNEL_OK")
</pallas_src>

<mosaic_0001>
module attributes {stable_mosaic.version = 11 : i64} {
  func.func @_decoder_kernel(%arg0: i32, %arg1: memref<64x16xf32, #tpu.memory_space<vmem>>, %arg2: memref<16x128xbf16, #tpu.memory_space<vmem>>, %arg3: memref<1x128xf32, #tpu.memory_space<vmem>>, %arg4: memref<128x128xbf16, #tpu.memory_space<vmem>>, %arg5: memref<1x128xf32, #tpu.memory_space<vmem>>, %arg6: memref<64x128xf32, #tpu.memory_space<vmem>>) attributes {dimension_semantics = [#tpu.dimension_semantics<parallel>], iteration_bounds = array<i64: 2>, scalar_prefetch = 0 : i64, scratch_operands = 0 : i64, tpu.core_type = #tpu.core_type<tc>, window_params = [{transform_indices = @transform_0, window_bounds = array<i64: 64, 16>}, {pipeline_mode = #tpu.pipeline_mode<synchronous>, transform_indices = @transform_1, window_bounds = array<i64: 16, 128>}, {pipeline_mode = #tpu.pipeline_mode<synchronous>, transform_indices = @transform_2, window_bounds = array<i64: 1, 128>}, {pipeline_mode = #tpu.pipeline_mode<synchronous>, transform_indices = @transform_3, window_bounds = array<i64: 128, 128>}, {pipeline_mode = #tpu.pipeline_mode<synchronous>, transform_indices = @transform_4, window_bounds = array<i64: 1, 128>}, {transform_indices = @transform_5, window_bounds = array<i64: 64, 128>}]} {
    %c0 = arith.constant 0 : index
    %c0_0 = arith.constant 0 : index
    %0 = vector.load %arg1[%c0, %c0_0] : memref<64x16xf32, #tpu.memory_space<vmem>>, vector<64x16xf32>
    %1 = arith.truncf %0 : vector<64x16xf32> to vector<64x16xbf16>
    %c0_1 = arith.constant 0 : index
    %c0_2 = arith.constant 0 : index
    %2 = vector.load %arg2[%c0_1, %c0_2] : memref<16x128xbf16, #tpu.memory_space<vmem>>, vector<16x128xbf16>
    %cst = arith.constant dense<0.000000e+00> : vector<64x128xf32>
    %3 = tpu.matmul %1, %2, %cst {dimension_numbers = #tpu.dot_dimension_numbers<[1], [0], [0], [1], [0, 0, 1, 1], [], []>} : vector<64x16xbf16>, vector<16x128xbf16>, vector<64x128xf32> -> vector<64x128xf32>
    %c0_3 = arith.constant 0 : index
    %c0_4 = arith.constant 0 : index
    %4 = vector.load %arg3[%c0_3, %c0_4] : memref<1x128xf32, #tpu.memory_space<vmem>>, vector<1x128xf32>
    %5 = vector.broadcast %4 : vector<1x128xf32> to vector<64x128xf32>
    %6 = arith.addf %3, %5 : vector<64x128xf32>
    %cst_5 = arith.constant 0.000000e+00 : f32
    %7 = vector.broadcast %cst_5 : f32 to vector<64x128xf32>
    %8 = arith.maximumf %6, %7 : vector<64x128xf32>
    %9 = arith.truncf %8 : vector<64x128xf32> to vector<64x128xbf16>
    %c0_6 = arith.constant 0 : index
    %c0_7 = arith.constant 0 : index
    %10 = vector.load %arg4[%c0_6, %c0_7] : memref<128x128xbf16, #tpu.memory_space<vmem>>, vector<128x128xbf16>
    %cst_8 = arith.constant dense<0.000000e+00> : vector<64x128xf32>
    %11 = tpu.matmul %9, %10, %cst_8 {dimension_numbers = #tpu.dot_dimension_numbers<[1], [0], [0], [1], [0, 0, 1, 1], [], []>} : vector<64x128xbf16>, vector<128x128xbf16>, vector<64x128xf32> -> vector<64x128xf32>
    %c0_9 = arith.constant 0 : index
    %c0_10 = arith.constant 0 : index
    %12 = vector.load %arg5[%c0_9, %c0_10] : memref<1x128xf32, #tpu.memory_space<vmem>>, vector<1x128xf32>
    %13 = vector.broadcast %12 : vector<1x128xf32> to vector<64x128xf32>
    %14 = arith.addf %11, %13 : vector<64x128xf32>
    %cst_11 = arith.constant 0.000000e+00 : f32
    %15 = vector.broadcast %cst_11 : f32 to vector<64x128xf32>
    %16 = arith.subf %15, %14 : vector<64x128xf32>
    %17 = math.exp %16 : vector<64x128xf32>
    %cst_12 = arith.constant 1.000000e+00 : f32
    %18 = vector.broadcast %cst_12 : f32 to vector<64x128xf32>
    %19 = arith.addf %18, %17 : vector<64x128xf32>
    %20 = tpu.reciprocal %19 {approx = true} : vector<64x128xf32> -> vector<64x128xf32>
    %c0_13 = arith.constant 0 : index
    %c0_14 = arith.constant 0 : index
    %21 = vector.load %arg6[%c0_13, %c0_14] : memref<64x128xf32, #tpu.memory_space<vmem>>, vector<64x128xf32>
    tpu.vector_store %arg6[%c0_13, %c0_14], %20 {strides = array<i32>} : memref<64x128xf32, #tpu.memory_space<vmem>>, vector<64x128xf32>,
    return
  }
  func.func @transform_0(%arg0: i32) -> (i32, i32) {
    %c0_i32 = arith.constant 0 : i32
    %c0_i32_0 = arith.constant 0 : i32
    return %arg0, %c0_i32 : i32, i32
  }
  func.func @transform_1(%arg0: i32) -> (i32, i32) {
    %c0_i32 = arith.constant 0 : i32
    %c0_i32_0 = arith.constant 0 : i32
    %c0_i32_1 = arith.constant 0 : i32
    return %c0_i32, %c0_i32_0 : i32, i32
  }
  func.func @transform_2(%arg0: i32) -> (i32, i32) {
    %c0_i32 = arith.constant 0 : i32
    %c0_i32_0 = arith.constant 0 : i32
    %c0_i32_1 = arith.constant 0 : i32
    return %c0_i32, %c0_i32_0 : i32, i32
  }
  func.func @transform_3(%arg0: i32) -> (i32, i32) {
    %c0_i32 = arith.constant 0 : i32
    %c0_i32_0 = arith.constant 0 : i32
    %c0_i32_1 = arith.constant 0 : i32
    return %c0_i32, %c0_i32_0 : i32, i32
  }
  func.func @transform_4(%arg0: i32) -> (i32, i32) {
    %c0_i32 = arith.constant 0 : i32
    %c0_i32_0 = arith.constant 0 : i32
    %c0_i32_1 = arith.constant 0 : i32
    return %c0_i32, %c0_i32_0 : i32, i32
  }
  func.func @transform_5(%arg0: i32) -> (i32, i32) {
    %c0_i32 = arith.constant 0 : i32
    %c0_i32_0 = arith.constant 0 : i32
    return %arg0, %c0_i32 : i32, i32
  }
}

</mosaic_0001>

<llo_original>
// kernel: tpu_custom_call.1
$region0: #{tpu_custom_call.1}
  #allocation0 [shape = 'u32[]', space=smem, size = 0x4, offset = 0x4, fixed_abs, tag = 'smem constant byte address 0x4 - core index']
  #allocation1 [shape = 'u32[144,128]{1,0:T(1,128)}', space=vmem, size = 0x12000, scoped, tag = 'internal scratch']
  %s0 = inlined_call_operand.hbm [shape: f32[128,16], index: 0, kind: input, shape index: {}]
  %s1 = inlined_call_operand.hbm [shape: bf16[16,128], index: 1, kind: input, shape index: {}]
  %s2 = inlined_call_operand.hbm [shape: f32[1,128], index: 2, kind: input, shape index: {}]
  %s3 = inlined_call_operand.hbm [shape: bf16[128,128], index: 3, kind: input, shape index: {}]
  %s4 = inlined_call_operand.hbm [shape: f32[1,128], index: 4, kind: input, shape index: {}]
  %s5 = inlined_call_operand.hbm [shape: f32[128,128], index: 5, kind: output, shape index: {}]
  %s6 = sld [smem:[#allocation0]]
  $region73: #{tpu_custom_call.1} parent=0
    _
  %s8 = ssub.s32 1, %s6
  %s9 = scalar_select 0, %s8, %s6
  $region1: #{tpu_custom_call.1} parent=0
    #allocation2 [shape = 'u8[65536]{0}', space=vmem, size = 0x10000, scoped, tag = 'input window, operand 0']
    #allocation3 [shape = 's32[2]{0}', space=sflag, size = 0x8, scoped, tag = 'scoped memory for tpu_custom_call.1']
    #allocation4 [shape = 's32[2]{0}', space=sflag, size = 0x8, scoped, tag = 'scoped memory for tpu_custom_call.1']
    #allocation5 [shape = 'u8[4096]{0}', space=vmem, size = 0x1000, scoped, tag = 'input window, operand 1, single buffered']
    #allocation6 [shape = 's32[1]{0}', space=sflag, size = 0x4, scoped, tag = 'scoped memory for tpu_custom_call.1']
    #allocation7 [shape = 'u8[512]{0}', space=vmem, size = 0x400, scoped, tag = 'input window, operand 2, single buffered']
    #allocation8 [shape = 'u8[32768]{0}', space=vmem, size = 0x8000, scoped, tag = 'input window, operand 3, single buffered']
    #allocation9 [shape = 's32[1]{0}', space=sflag, size = 0x4, scoped, tag = 'scoped memory for tpu_custom_call.1']
    #allocation10 [shape = 'u8[512]{0}', space=vmem, size = 0x400, scoped, tag = 'input window, operand 4, single buffered']
    #allocation11 [shape = 'u8[65536]{0}', space=vmem, size = 0x10000, scoped, tag = 'output window, operand 0']
    %10 = vsyncpa [#allocation3], 0
    %s11 = scalar_lea.sflag [#allocation3], 1
    %12 = vsyncpa %s11, 0
    %13 = vsyncpa [#allocation6], 0
    %14 = vsyncpa [#allocation9], 0
    %15 = vsyncpa [#allocation4], 0
    %s16 = scalar_lea.sflag [#allocation4], 1
    %17 = vsyncpa %s16, 0
    loop: start=0, step=1, limit=4
    $region2: #{tpu_custom_call.1} parent=1 // loop_pre_header
      _
    $region3: #{tpu_custom_call.1} parent=1 // loop_header
      %s19 = sphi 0, %s23
      %p20 = scmp.ge.s32.totalorder %s19, 4
      %s29 = sphi 0, %s31
      %s32 = sphi 0, %s29
      %s33 = sphi 0, %s32
      %s49 = sphi 0, %s33
      %s53 = sphi 0, %s53
      %s55 = sphi 0, %s53
      %s56 = sphi 0, %s55
      %s70 = sphi 0, %s56
      %s74 = sphi 0, %s74
      %s76 = sphi 0, %s74
      %s77 = sphi 0, %s76
      %s91 = sphi 0, %s77
      %s95 = sphi 0, %s95
      %s97 = sphi 0, %s95
      %s98 = sphi 0, %s97
      %s112 = sphi 0, %s98
      %s116 = sphi 0, %s116
      %s118 = sphi 0, %s116
      %s119 = sphi 0, %s118
      %s133 = sphi 0, %s119
      %s139 = sphi 0, %s141
      %s142 = sphi 0, %s139
      %s143 = sphi 0, %s142
      %s159 = sphi 0, %s143
    $region4: #{tpu_custom_call.1} parent=1 // loop_header_branch
      %22 = sbr.rel (%p20) target = $region8
    $region5: #{tpu_custom_call.1} parent=1 // loop_body
      %s24 = ssub.s32 %s19, 1
      %s25 = ssub.s32 %s19, 2
      %s26 = sadd.s32 %s19, 1
      %s27 = ssub.s32 %s19, %s26
      %p28 = scmp.eq.s32.totalorder %s27, 0
      %s30 = sadd.s32 %s29, 1
      %s31 = scalar_select %p28, %s29, %s30
      %p34 = pneg %p28
      %p35 = scmp.eq.s32.totalorder %s19, 1
      %p36 = por %p34, %p35
      %p37 = scmp.ne.s32.totalorder %s29, %s32
      %p38 = scmp.eq.s32.totalorder %s19, 0
      %p39 = por %p37, %p38
      %p40 = scmp.ne.s32.totalorder %s29, %s32
      %p41 = scmp.eq.s32.totalorder %s24, 1
      %p42 = por %p40, %p41
      %p43 = scmp.ne.s32.totalorder %s32, %s33
      %p44 = scmp.eq.s32.totalorder %s24, 0
      %p45 = por %p43, %p44
      %p46 = scmp.ne.s32.totalorder %s32, %s33
      %p47 = scmp.eq.s32.totalorder %s25, 1
      %p48 = por %p46, %p47
      %p50 = scmp.ne.s32.totalorder %s33, %s49
      %p51 = scmp.eq.s32.totalorder %s25, 0
      %p52 = por %p50, %p51
      %s54 = sadd.s32 %s53, 1
      %p57 = scmp.eq.s32.totalorder %s19, 1
      %p58 = scmp.ne.s32.totalorder %s53, %s55
      %p59 = scmp.eq.s32.totalorder %s19, 0
      %p60 = por %p58, %p59
      %p61 = scmp.ne.s32.totalorder %s53, %s55
      %p62 = scmp.eq.s32.totalorder %s24, 1
      %p63 = por %p61, %p62
      %p64 = scmp.ne.s32.totalorder %s55, %s56
      %p65 = scmp.eq.s32.totalorder %s24, 0
      %p66 = por %p64, %p65
      %p67 = scmp.ne.s32.totalorder %s55, %s56
      %p68 = scmp.eq.s32.totalorder %s25, 1
      %p69 = por %p67, %p68
      %p71 = scmp.ne.s32.totalorder %s56, %s70
      %p72 = scmp.eq.s32.totalorder %s25, 0
      %p73 = por %p71, %p72
      %s75 = sadd.s32 %s74, 1
      %p78 = scmp.eq.s32.totalorder %s19, 1
      %p79 = scmp.ne.s32.totalorder %s74, %s76
      %p80 = scmp.eq.s32.totalorder %s19, 0
      %p81 = por %p79, %p80
      %p82 = scmp.ne.s32.totalorder %s74, %s76
      %p83 = scmp.eq.s32.totalorder %s24, 1
      %p84 = por %p82, %p83
      %p85 = scmp.ne.s32.totalorder %s76, %s77
      %p86 = scmp.eq.s32.totalorder %s24, 0
      %p87 = por %p85, %p86
      %p88 = scmp.ne.s32.totalorder %s76, %s77
      %p89 = scmp.eq.s32.totalorder %s25, 1
      %p90 = por %p88, %p89
      %p92 = scmp.ne.s32.totalorder %s77, %s91
      %p93 = scmp.eq.s32.totalorder %s25, 0
      %p94 = por %p92, %p93
      %s96 = sadd.s32 %s95, 1
      %p99 = scmp.eq.s32.totalorder %s19, 1
      %p100 = scmp.ne.s32.totalorder %s95, %s97
      %p101 = scmp.eq.s32.totalorder %s19, 0
      %p102 = por %p100, %p101
      %p103 = scmp.ne.s32.totalorder %s95, %s97
      %p104 = scmp.eq.s32.totalorder %s24, 1
      %p105 = por %p103, %p104
      %p106 = scmp.ne.s32.totalorder %s97, %s98
      %p107 = scmp.eq.s32.totalorder %s24, 0
      %p108 = por %p106, %p107
      %p109 = scmp.ne.s32.totalorder %s97, %s98
      %p110 = scmp.eq.s32.totalorder %s25, 1
      %p111 = por %p109, %p110
      %p113 = scmp.ne.s32.totalorder %s98, %s112
      %p114 = scmp.eq.s32.totalorder %s25, 0
      %p115 = por %p113, %p114
      %s117 = sadd.s32 %s116, 1
      %p120 = scmp.eq.s32.totalorder %s19, 1
      %p121 = scmp.ne.s32.totalorder %s116, %s118
      %p122 = scmp.eq.s32.totalorder %s19, 0
      %p123 = por %p121, %p122
      %p124 = scmp.ne.s32.totalorder %s116, %s118
      %p125 = scmp.eq.s32.totalorder %s24, 1
      %p126 = por %p124, %p125
      %p127 = scmp.ne.s32.totalorder %s118, %s119
      %p128 = scmp.eq.s32.totalorder %s24, 0
      %p129 = por %p127, %p128
      %p130 = scmp.ne.s32.totalorder %s118, %s119
      %p131 = scmp.eq.s32.totalorder %s25, 1
      %p132 = por %p130, %p131
      %p134 = scmp.ne.s32.totalorder %s119, %s133
      %p135 = scmp.eq.s32.totalorder %s25, 0
      %p136 = por %p134, %p135
      %s137 = ssub.s32 %s19, %s26
      %p138 = scmp.eq.s32.totalorder %s137, 0
      %s140 = sadd.s32 %s139, 1
      %s141 = scalar_select %p138, %s139, %s140
      %p144 = pneg %p138
      %p145 = scmp.eq.s32.totalorder %s19, 1
      %p146 = por %p144, %p145
      %p147 = scmp.ne.s32.totalorder %s139, %s142
      %p148 = scmp.eq.s32.totalorder %s19, 0
      %p149 = por %p147, %p148
      %p150 = scmp.ne.s32.totalorder %s139, %s142
      %p151 = scmp.eq.s32.totalorder %s24, 1
      %p152 = por %p150, %p151
      %p153 = scmp.ne.s32.totalorder %s142, %s143
      %p154 = scmp.eq.s32.totalorder %s24, 0
      %p155 = por %p153, %p154
      %p156 = scmp.ne.s32.totalorder %s142, %s143
      %p157 = scmp.eq.s32.totalorder %s25, 1
      %p158 = por %p156, %p157
      %p160 = scmp.ne.s32.totalorder %s143, %s159
      %p161 = scmp.eq.s32.totalorder %s25, 0
      %p162 = por %p160, %p161
      %p163 = scmp.le.s32.totalorder 1, %s19
      %p164 = scmp.lt.s32.totalorder %s19, 3
      %p165 = pnand %p163, %p164
      %p166 = pneg %p165
      // Predicated region
      $region9: #{tpu_custom_call.1} parent=5 // pred_check
        _
      $region10: #{tpu_custom_call.1} parent=5 // pred_check_branch
        %168 = sbr.rel (%p165) target = $region12
      $region11: #{tpu_custom_call.1} parent=5 // pred_region
        %s169 = ssub.s32 %s19, 1
        // Predicated region
        $region13: #{tpu_custom_call.1} parent=11 // pred_check
          %p170 = pneg %p66
        $region14: #{tpu_custom_call.1} parent=11 // pred_check_branch
          %172 = sbr.rel (%p170) target = $region16
        $region15: #{tpu_custom_call.1} parent=11 // pred_region
          %s174 = ssub.s32 128, 128
          %175 = vsyncadd [#allocation6], %s174
          %s176 = sshll.u32 [#allocation5], 4
          %s177 = int_to_ptr.vmem [resolvable:$true] %s176
          %182 = dma.hbm_to_vmem [thread:$0]  %s1, 128, %s177, [#allocation6], 64, 64, 4
        $region16: #{tpu_custom_call.1} parent=11 // pred_fallthru
          _
        // Predicated region
        $region17: #{tpu_custom_call.1} parent=11 // pred_check
          %p183 = pneg %p87
        $region18: #{tpu_custom_call.1} parent=11 // pred_check_branch
          %185 = sbr.rel (%p183) target = $region20
        $region19: #{tpu_custom_call.1} parent=11 // pred_region
          %s187 = ssub.s32 16, 16
          %188 = vsyncadd [#allocation6], %s187
          %s190 = sshll.u32 [#allocation7], 4
          %s191 = int_to_ptr.vmem [resolvable:$true] %s190
          %193 = dma.hbm_to_vmem [thread:$0]  %s2, 16, %s191, [#allocation6]
        $region20: #{tpu_custom_call.1} parent=11 // pred_fallthru
          _
        // Predicated region
        $region21: #{tpu_custom_call.1} parent=11 // pred_check
          %p194 = pneg %p108
        $region22: #{tpu_custom_call.1} parent=11 // pred_check_branch
          %196 = sbr.rel (%p194) target = $region24
        $region23: #{tpu_custom_call.1} parent=11 // pred_region
          %s198 = ssub.s32 1024, 1024
          %199 = vsyncadd [#allocation9], %s198
          %s200 = sshll.u32 [#allocation8], 4
          %s201 = int_to_ptr.vmem [resolvable:$true] %s200
          %206 = dma.hbm_to_vmem [thread:$0]  %s3, 1024, %s201, [#allocation9], 64, 64, 4
        $region24: #{tpu_custom_call.1} parent=11 // pred_fallthru
          _
        // Predicated region
        $region25: #{tpu_custom_call.1} parent=11 // pred_check
          %p207 = pneg %p129
        $region26: #{tpu_custom_call.1} parent=11 // pred_check_branch
          %209 = sbr.rel (%p207) target = $region28
        $region27: #{tpu_custom_call.1} parent=11 // pred_region
          %s211 = ssub.s32 16, 16
          %212 = vsyncadd [#allocation9], %s211
          %s214 = sshll.u32 [#allocation10], 4
          %s215 = int_to_ptr.vmem [resolvable:$true] %s214
          %217 = dma.hbm_to_vmem [thread:$0]  %s4, 16, %s215, [#allocation9]
        $region28: #{tpu_custom_call.1} parent=11 // pred_fallthru
          _
      $region12: #{tpu_custom_call.1} parent=5 // pred_fallthru
        _
      %p218 = scmp.lt.s32.totalorder %s19, 2
      // Predicated region
      $region29: #{tpu_custom_call.1} parent=5 // pred_check
        %p219 = pneg %p218
      $region30: #{tpu_custom_call.1} parent=5 // pred_check_branch
        %221 = sbr.rel (%p219) target = $region32
      $region31: #{tpu_custom_call.1} parent=5 // pred_region
        // Predicated region
        $region33: #{tpu_custom_call.1} parent=31 // pred_check
          %p222 = pneg %p39
        $region34: #{tpu_custom_call.1} parent=31 // pred_check_branch
          %224 = sbr.rel (%p222) target = $region36
        $region35: #{tpu_custom_call.1} parent=31 // pred_region
          %s225 = sand.u32 %s29, 1
          %s226 = scalar_lea.sflag [#allocation3], %s225
          %s227 = sand.u32 %s29, 1
          %s228 = smul.addr %s227, 64
          %s229 = scalar_lea.vmem [#allocation2], %s228
          %s230 = smul.u32 8, %s19
          %s232 = ssub.s32 1024, 1024
          %233 = vsyncadd %s226, %s232
          %s234 = smul.addr %s230, 128
          %s235 = scalar_lea.hbm %s0, %s234
          %s236 = sshll.u32 %s229, 4
          %s237 = int_to_ptr.vmem [resolvable:$true] %s236
          %242 = dma.hbm_to_vmem [thread:$0]  %s235, 1024, %s237, %s226, 128, 128, 8
        $region36: #{tpu_custom_call.1} parent=31 // pred_fallthru
          _
      $region32: #{tpu_custom_call.1} parent=5 // pred_fallthru
        _
      %p243 = scmp.le.s32.totalorder 1, %s19
      %p244 = scmp.lt.s32.totalorder %s19, 3
      %p245 = pnand %p243, %p244
      %p246 = pneg %p245
      // Predicated region
      $region37: #{tpu_custom_call.1} parent=5 // pred_check
        _
      $region38: #{tpu_custom_call.1} parent=5 // pred_check_branch
        %248 = sbr.rel (%p245) target = $region40
      $region39: #{tpu_custom_call.1} parent=5 // pred_region
        %s249 = ssub.s32 %s19, 1
        %s250 = sand.u32 %s32, 1
        %s251 = scalar_lea.sflag [#allocation3], %s250
        %s252 = sand.u32 %s32, 1
        %s253 = smul.addr %s252, 64
        %s254 = scalar_lea.vmem [#allocation2], %s253
        // Predicated region
        $region41: #{tpu_custom_call.1} parent=39 // pred_check
          %p255 = pneg %p45
        $region42: #{tpu_custom_call.1} parent=39 // pred_check_branch
          %257 = sbr.rel (%p255) target = $region44
        $region43: #{tpu_custom_call.1} parent=39 // pred_region
          %258 = dma.done %s251, 1024
        $region44: #{tpu_custom_call.1} parent=39 // pred_fallthru
          _
        // Predicated region
        $region45: #{tpu_custom_call.1} parent=39 // pred_check
          %p259 = pneg %p66
        $region46: #{tpu_custom_call.1} parent=39 // pred_check_branch
          %261 = sbr.rel (%p259) target = $region48
        $region47: #{tpu_custom_call.1} parent=39 // pred_region
          %262 = dma.done [#allocation6], 128
        $region48: #{tpu_custom_call.1} parent=39 // pred_fallthru
          _
        // Predicated region
        $region49: #{tpu_custom_call.1} parent=39 // pred_check
          %p263 = pneg %p87
        $region50: #{tpu_custom_call.1} parent=39 // pred_check_branch
          %265 = sbr.rel (%p263) target = $region52
        $region51: #{tpu_custom_call.1} parent=39 // pred_region
          %266 = dma.done [#allocation6], 16
        $region52: #{tpu_custom_call.1} parent=39 // pred_fallthru
          _
        // Predicated region
        $region53: #{tpu_custom_call.1} parent=39 // pred_check
          %p267 = pneg %p108
        $region54: #{tpu_custom_call.1} parent=39 // pred_check_branch
          %269 = sbr.rel (%p267) target = $region56
        $region55: #{tpu_custom_call.1} parent=39 // pred_region
          %270 = dma.done [#allocation9], 1024
        $region56: #{tpu_custom_call.1} parent=39 // pred_fallthru
          _
        // Predicated region
        $region57: #{tpu_custom_call.1} parent=39 // pred_check
          %p271 = pneg %p129
        $region58: #{tpu_custom_call.1} parent=39 // pred_check_branch
          %273 = sbr.rel (%p271) target = $region60
        $region59: #{tpu_custom_call.1} parent=39 // pred_region
          %274 = dma.done [#allocation9], 16
        $region60: #{tpu_custom_call.1} parent=39 // pred_fallthru
          _
        %s275 = sand.u32 %s32, 1
        %s276 = scalar_lea.sflag [#allocation3], %s275
        %s277 = sand.u32 %s32, 1
        %s278 = smul.addr %s277, 64
        %s279 = scalar_lea.vmem [#allocation2], %s278
        %p280 = pneg %p45
        %p281 = pneg %p42
        %p282 = pneg %p66
        %p283 = pneg %p63
        %p284 = pneg %p87
        %p285 = pneg %p84
        %p286 = pneg %p108
        %p287 = pneg %p105
        %p288 = pneg %p129
        %p289 = pneg %p126
        %p290 = pneg %p155
        %p291 = pneg %p152
        %s292 = sand.u32 %s142, 1
        %s293 = scalar_lea.sflag [#allocation4], %s292
        %s294 = sand.u32 %s142, 1
        %s295 = smul.addr %s294, 64
        %s296 = scalar_lea.vmem [#allocation11], %s295
        %s297 = smul.u32 8, %s24
        %s298 = smul.u32 8, %s24
        %v300 = vld [vmem:[%s254] sm:$0xff]
        %v301 = vld [vmem:[%s254 + $0x8] sm:$0xff]
        %v302 = vld [vmem:[%s254 + $0x10] sm:$0xff]
        %v303 = vld [vmem:[%s254 + $0x18] sm:$0xff]
        %v304 = vld [vmem:[%s254 + $0x20] sm:$0xff]
        %v305 = vld [vmem:[%s254 + $0x28] sm:$0xff]
        %v306 = vld [vmem:[%s254 + $0x30] sm:$0xff]
        %v307 = vld [vmem:[%s254 + $0x38] sm:$0xff]
        %v308 = vpack.c.bf16 %v301, %v300
        %v309 = vpack.c.bf16 %v303, %v302
        %v310 = vpack.c.bf16 %v305, %v304
        %v311 = vpack.c.bf16 %v307, %v306
        %v312 = vld [vmem:[#allocation5] sm:$0xf]
        %v313 = vld [vmem:[#allocation5 + $0x4] sm:$0xf]
        %v314 = vld [vmem:[#allocation7] sm:$0x1]
        %v316 = vlaneseq
        %v317 = vshrl.u32 %v316, 7
        %v318 = vsub.s32 0, %v317
        %v319 = vrot.slane %v314, %v318
        %v323 = vunpack.c.l.b16 %v312
        %v324 = vunpack.c.l.b16 %v313
        %v325 = vpack.c.b16 %v324, %v323
        %vm327 = vcmask 130048
        %v329 = vsel %vm327, %v308, 0
        %v332 = vsel %vm327, %v309, 0
        %v335 = vsel %vm327, %v310, 0
        %v338 = vsel %vm327, %v311, 0
        %340 = vmatprep.subr.bf16.mxu0 0
        %341 = vmatpush1.bf16.msra.mxu0 %v325
        %342 = vmatprep.subr.bf16.mxu0 0
        %343 = vmatpush1.bf16.msra.mxu0 0
        %344 = vmatprep.subr.bf16.mxu0 0
        %345 = vmatpush1.bf16.msra.mxu0 0
        %346 = vmatprep.subr.bf16.mxu0 0
        %347 = vmatpush1.bf16.msra.mxu0 0
        %348 = vmatprep.subr.bf16.mxu0 0
        %349 = vmatpush1.bf16.msra.mxu0 0
        %350 = vmatprep.subr.bf16.mxu0 0
        %351 = vmatpush1.bf16.msra.mxu0 0
        %352 = vmatprep.subr.bf16.mxu0 0
        %353 = vmatpush1.bf16.msra.mxu0 0
        %354 = vmatprep.subr.bf16.mxu0 0
        %355 = vmatpush1.bf16.msra.mxu0 0
        %356 = vmatprep.subr.bf16.mxu0 0
        %357 = vmatpush1.bf16.msra.mxu0 0
        %358 = vmatprep.subr.bf16.mxu0 0
        %359 = vmatpush1.bf16.msra.mxu0 0
        %360 = vmatprep.subr.bf16.mxu0 0
        %361 = vmatpush1.bf16.msra.mxu0 0
        %362 = vmatprep.subr.bf16.mxu0 0
        %363 = vmatpush1.bf16.msra.mxu0 0
        %364 = vmatprep.subr.bf16.mxu0 0
        %365 = vmatpush1.bf16.msra.mxu0 0
        %366 = vmatprep.subr.bf16.mxu0 0
        %367 = vmatpush1.bf16.msra.mxu0 0
        %368 = vmatprep.subr.bf16.mxu0 0
        %369 = vmatpush1.bf16.msra.mxu0 0
        %370 = vmatprep.subr.bf16.mxu0 0
        %371 = vmatpush1.bf16.msra.mxu0 0
        %372 = vmatprep.mubr.bf16.mxu0 0
        %373 = vmatmul.mubr.bf16.gmra.mrb[0].mxu0 %v329
        %v374 = vpop.f32.mrb[0].mxu0
        %v375 = vadd.f32 %v319, %v374
        %v376 = vpop.f32.mrb[0].mxu0
        %v377 = vpop.f32.mrb[0].mxu0
        %v378 = vadd.f32 %v319, %v377
        %v379 = vpop.f32.mrb[0].mxu0
        %380 = vmatprep.mubr.bf16.mxu0 0
        %381 = vmatmul.mubr.bf16.gmra.mrb[0].mxu0 %v332
        %v382 = vpop.f32.mrb[0].mxu0
        %v383 = vadd.f32 %v319, %v382
        %v384 = vpop.f32.mrb[0].mxu0
        %v385 = vpop.f32.mrb[0].mxu0
        %v386 = vadd.f32 %v319, %v385
        %v387 = vpop.f32.mrb[0].mxu0
        %388 = vmatprep.mubr.bf16.mxu0 0
        %389 = vmatmul.mubr.bf16.gmra.mrb[0].mxu0 %v335
        %v390 = vpop.f32.mrb[0].mxu0
        %v391 = vadd.f32 %v319, %v390
        %v392 = vpop.f32.mrb[0].mxu0
        %v393 = vpop.f32.mrb[0].mxu0
        %v394 = vadd.f32 %v319, %v393
        %v395 = vpop.f32.mrb[0].mxu0
        %396 = vmatprep.mubr.bf16.mxu0 0
        %397 = vmatmul.mubr.bf16.gmra.mrb[0].mxu0 %v338
        %v398 = vpop.f32.mrb[0].mxu0
        %v399 = vadd.f32 %v319, %v398
        %v400 = vpop.f32.mrb[0].mxu0
        %v401 = vpop.f32.mrb[0].mxu0
        %v402 = vadd.f32 %v319, %v401
        %v403 = vpop.f32.mrb[0].mxu0
        %404 = vdwg.mxu0
        %v405 = vmax.f32 %v375, 0.0
        %v406 = vmax.f32 %v378, 0.0
        %v407 = vmax.f32 %v383, 0.0
        %v408 = vmax.f32 %v386, 0.0
        %v409 = vmax.f32 %v391, 0.0
        %v410 = vmax.f32 %v394, 0.0
        %v411 = vmax.f32 %v399, 0.0
        %v412 = vmax.f32 %v402, 0.0
        %v413 = vpack.c.bf16 %v406, %v405
        %v414 = vpack.c.bf16 %v408, %v407
        %v415 = vpack.c.bf16 %v410, %v409
        %v416 = vpack.c.bf16 %v412, %v411
        %v417 = vld [vmem:[#allocation8] sm:$0xf]
        %v418 = vld [vmem:[#allocation8 + $0x4] sm:$0xf]
        %v419 = vld [vmem:[#allocation8 + $0x8] sm:$0xf]
        %v420 = vld [vmem:[#allocation8 + $0xc] sm:$0xf]
        %v421 = vld [vmem:[#allocation8 + $0x10] sm:$0xf]
        %v422 = vld [vmem:[#allocation8 + $0x14] sm:$0xf]
        %v423 = vld [vmem:[#allocation8 + $0x18] sm:$0xf]
        %v424 = vld [vmem:[#allocation8 + $0x1c] sm:$0xf]
        %v425 = vld [vmem:[#allocation8 + $0x20] sm:$0xf]
        %v426 = vld [vmem:[#allocation8 + $0x24] sm:$0xf]
        %v427 = vld [vmem:[#allocation8 + $0x28] sm:$0xf]
        %v428 = vld [vmem:[#allocation8 + $0x2c] sm:$0xf]
        %v429 = vld [vmem:[#allocation8 + $0x30] sm:$0xf]
        %v430 = vld [vmem:[#allocation8 + $0x34] sm:$0xf]
        %v431 = vld [vmem:[#allocation8 + $0x38] sm:$0xf]
        %v432 = vld [vmem:[#allocation8 + $0x3c] sm:$0xf]
        %v433 = vld [vmem:[#allocation10] sm:$0x1]
        %v435 = vlaneseq
        %v436 = vshrl.u32 %v435, 7
        %v437 = vsub.s32 0, %v436
        %v438 = vrot.slane %v433, %v437
        %v456 = vunpack.c.l.b16 %v417
        %v457 = vunpack.c.l.b16 %v418
        %v458 = vunpack.c.l.b16 %v419
        %v459 = vunpack.c.l.b16 %v420
        %v460 = vunpack.c.l.b16 %v421
        %v461 = vunpack.c.l.b16 %v422
        %v462 = vunpack.c.l.b16 %v423
        %v463 = vunpack.c.l.b16 %v424
        %v464 = vunpack.c.l.b16 %v425
        %v465 = vunpack.c.l.b16 %v426
        %v466 = vunpack.c.l.b16 %v427
        %v467 = vunpack.c.l.b16 %v428
        %v468 = vunpack.c.l.b16 %v429
        %v469 = vunpack.c.l.b16 %v430
        %v470 = vunpack.c.l.b16 %v431
        %v471 = vunpack.c.l.b16 %v432
        %v472 = vpack.c.b16 %v457, %v456
        %v473 = vpack.c.b16 %v459, %v458
        %v474 = vpack.c.b16 %v461, %v460
        %v475 = vpack.c.b16 %v463, %v462
        %v476 = vpack.c.b16 %v465, %v464
        %v477 = vpack.c.b16 %v467, %v466
        %v478 = vpack.c.b16 %v469, %v468
        %v479 = vpack.c.b16 %v471, %v470
        %488 = vmatprep.subr.bf16.mxu0 0
        %489 = vmatpush1.bf16.msra.mxu0 %v472
        %490 = vmatprep.subr.bf16.mxu0 0
        %491 = vmatpush1.bf16.msra.mxu0 %v473
        %492 = vmatprep.subr.bf16.mxu0 0
        %493 = vmatpush1.bf16.msra.mxu0 %v474
        %494 = vmatprep.subr.bf16.mxu0 0
        %495 = vmatpush1.bf16.msra.mxu0 %v475
        %496 = vmatprep.subr.bf16.mxu0 0
        %497 = vmatpush1.bf16.msra.mxu0 %v476
        %498 = vmatprep.subr.bf16.mxu0 0
        %499 = vmatpush1.bf16.msra.mxu0 %v477
        %500 = vmatprep.subr.bf16.mxu0 0
        %501 = vmatpush1.bf16.msra.mxu0 %v478
        %502 = vmatprep.subr.bf16.mxu0 0
        %503 = vmatpush1.bf16.msra.mxu0 %v479
        %504 = vmatprep.subr.bf16.mxu0 0
        %505 = vmatpush1.bf16.msra.mxu0 0
        %506 = vmatprep.subr.bf16.mxu0 0
        %507 = vmatpush1.bf16.msra.mxu0 0
        %508 = vmatprep.subr.bf16.mxu0 0
        %509 = vmatpush1.bf16.msra.mxu0 0
        %510 = vmatprep.subr.bf16.mxu0 0
        %511 = vmatpush1.bf16.msra.mxu0 0
        %512 = vmatprep.subr.bf16.mxu0 0
        %513 = vmatpush1.bf16.msra.mxu0 0
        %514 = vmatprep.subr.bf16.mxu0 0
        %515 = vmatpush1.bf16.msra.mxu0 0
        %516 = vmatprep.subr.bf16.mxu0 0
        %517 = vmatpush1.bf16.msra.mxu0 0
        %518 = vmatprep.subr.bf16.mxu0 0
        %519 = vmatpush1.bf16.msra.mxu0 0
        %520 = vmatprep.mubr.bf16.mxu0 0
        %521 = vmatmul.mubr.bf16.gmra.mrb[0].mxu0 %v413
        %v522 = vpop.f32.mrb[0].mxu0
        %v523 = vadd.f32 %v438, %v522
        %v524 = vpop.f32.mrb[0].mxu0
        %v525 = vpop.f32.mrb[0].mxu0
        %v526 = vadd.f32 %v438, %v525
        %v527 = vpop.f32.mrb[0].mxu0
        %528 = vmatprep.mubr.bf16.mxu0 0
        %529 = vmatmul.mubr.bf16.gmra.mrb[0].mxu0 %v414
        %v530 = vpop.f32.mrb[0].mxu0
        %v531 = vadd.f32 %v438, %v530
        %v532 = vpop.f32.mrb[0].mxu0
        %v533 = vpop.f32.mrb[0].mxu0
        %v534 = vadd.f32 %v438, %v533
        %v535 = vpop.f32.mrb[0].mxu0
        %536 = vmatprep.mubr.bf16.mxu0 0
        %537 = vmatmul.mubr.bf16.gmra.mrb[0].mxu0 %v415
        %v538 = vpop.f32.mrb[0].mxu0
        %v539 = vadd.f32 %v438, %v538
        %v540 = vpop.f32.mrb[0].mxu0
        %v541 = vpop.f32.mrb[0].mxu0
        %v542 = vadd.f32 %v438, %v541
        %v543 = vpop.f32.mrb[0].mxu0
        %544 = vmatprep.mubr.bf16.mxu0 0
        %545 = vmatmul.mubr.bf16.gmra.mrb[0].mxu0 %v416
        %v546 = vpop.f32.mrb[0].mxu0
        %v547 = vadd.f32 %v438, %v546
        %v548 = vpop.f32.mrb[0].mxu0
        %v549 = vpop.f32.mrb[0].mxu0
        %v550 = vadd.f32 %v438, %v549
        %v551 = vpop.f32.mrb[0].mxu0
        %552 = vdwg.mxu0
        %v553 = vsub.f32 0.0, %v523
        %v554 = vsub.f32 0.0, %v526
        %v555 = vsub.f32 0.0, %v531
        %v556 = vsub.f32 0.0, %v534
        %v557 = vsub.f32 0.0, %v539
        %v558 = vsub.f32 0.0, %v542
        %v559 = vsub.f32 0.0, %v547
        %v560 = vsub.f32 0.0, %v550
        %v561 = vmul.f32 %v553, 1.442695
        %v562 = vpow.pop %v561
        %v563 = vmul.f32 %v554, 1.442695
        %v564 = vpow.pop %v563
        %v565 = vmul.f32 %v555, 1.442695
        %v566 = vpow.pop %v565
        %v567 = vmul.f32 %v556, 1.442695
        %v568 = vpow.pop %v567
        %v569 = vmul.f32 %v557, 1.442695
        %v570 = vpow.pop %v569
        %v571 = vmul.f32 %v558, 1.442695
        %v572 = vpow.pop %v571
        %v573 = vmul.f32 %v559, 1.442695
        %v574 = vpow.pop %v573
        %v575 = vmul.f32 %v560, 1.442695
        %v576 = vpow.pop %v575
        %v577 = vadd.f32 %v562, 1.0
        %v578 = vadd.f32 %v564, 1.0
        %v579 = vadd.f32 %v566, 1.0
        %v580 = vadd.f32 %v568, 1.0
        %v581 = vadd.f32 %v570, 1.0
        %v582 = vadd.f32 %v572, 1.0
        %v583 = vadd.f32 %v574, 1.0
        %v584 = vadd.f32 %v576, 1.0
        %v585 = vrcp.pop %v577
        %v586 = vrcp.pop %v578
        %v587 = vrcp.pop %v579
        %v588 = vrcp.pop %v580
        %v589 = vrcp.pop %v581
        %v590 = vrcp.pop %v582
        %v591 = vrcp.pop %v583
        %v592 = vrcp.pop %v584
        %593 = vst [vmem:[%s296] sm:$0xff] %v585
        %594 = vst [vmem:[%s296 + $0x8] sm:$0xff] %v586
        %595 = vst [vmem:[%s296 + $0x10] sm:$0xff] %v587
        %596 = vst [vmem:[%s296 + $0x18] sm:$0xff] %v588
        %597 = vst [vmem:[%s296 + $0x20] sm:$0xff] %v589
        %598 = vst [vmem:[%s296 + $0x28] sm:$0xff] %v590
        %599 = vst [vmem:[%s296 + $0x30] sm:$0xff] %v591
        %600 = vst [vmem:[%s296 + $0x38] sm:$0xff] %v592
        %s601 = sand.u32 %s142, 1
        %s602 = scalar_lea.sflag [#allocation4], %s601
        %s603 = sand.u32 %s142, 1
        %s604 = smul.addr %s603, 64
        %s605 = scalar_lea.vmem [#allocation11], %s604
        // Predicated region
        $region61: #{tpu_custom_call.1} parent=39 // pred_check
          %p606 = pneg %p152
        $region62: #{tpu_custom_call.1} parent=39 // pred_check_branch
          %608 = sbr.rel (%p606) target = $region64
        $region63: #{tpu_custom_call.1} parent=39 // pred_region
          %s609 = smul.u32 8, %s24
          %s611 = ssub.s32 1024, 1024
          %612 = vsyncadd %s602, %s611
          %s613 = smul.addr %s609, 128
          %s614 = scalar_lea.hbm %s5, %s613
          %s615 = sshll.u32 %s605, 4
          %s616 = int_to_ptr.vmem [resolvable:$true] %s615
          %621 = dma.vmem_to_hbm [thread:$0]  %s616, 1024, %s614, %s602, 128, 128, 8
        $region64: #{tpu_custom_call.1} parent=39 // pred_fallthru
          _
      $region40: #{tpu_custom_call.1} parent=5 // pred_fallthru
        _
      %p622 = scmp.le.s32.totalorder 2, %s19
      // Predicated region
      $region65: #{tpu_custom_call.1} parent=5 // pred_check
        %p623 = pneg %p622
      $region66: #{tpu_custom_call.1} parent=5 // pred_check_branch
        %625 = sbr.rel (%p623) target = $region68
      $region67: #{tpu_custom_call.1} parent=5 // pred_region
        %s626 = ssub.s32 %s19, 2
        // Predicated region
        $region69: #{tpu_custom_call.1} parent=67 // pred_check
          %p627 = pneg %p158
        $region70: #{tpu_custom_call.1} parent=67 // pred_check_branch
          %629 = sbr.rel (%p627) target = $region72
        $region71: #{tpu_custom_call.1} parent=67 // pred_region
          %s630 = sand.u32 %s143, 1
          %s631 = scalar_lea.sflag [#allocation4], %s630
          %s632 = sand.u32 %s143, 1
          %s633 = smul.addr %s632, 64
          %s634 = scalar_lea.vmem [#allocation11], %s633
          %635 = dma.done %s631, 1024
        $region72: #{tpu_custom_call.1} parent=67 // pred_fallthru
          _
      $region68: #{tpu_custom_call.1} parent=5 // pred_fallthru
        _
    $region6: #{tpu_custom_call.1} parent=1 // loop_footer
      %s23 = sadd.s32 1, %s19
    $region7: #{tpu_custom_call.1} parent=1 // loop_footer_branch
      %18 = sbr.rel target = $region3
    $region8: #{tpu_custom_call.1} parent=1 // loop_exit
      _
    %636 = vsyncpa [#allocation3], 1
    %s637 = scalar_lea.sflag [#allocation3], 1
    %638 = vsyncpa %s637, 1
    %639 = vsyncpa [#allocation6], 1
    %640 = vsyncpa [#allocation9], 1
    %641 = vsyncpa [#allocation4], 1
    %s642 = scalar_lea.sflag [#allocation4], 1
    %643 = vsyncpa %s642, 1

</llo_original>
